<compile_context>
chip_gen: v7x
topology: tpu7x:2x2x1
jax: 0.10.0
libtpu: 0.0.40
codegen_flags: <defaults>
</compile_context>

<pallas_src>
import jax
import jax.numpy as jnp
from jax.experimental import pallas as pl
from jax.experimental.pallas import tpu as pltpu

LANE = 128


def _round_up(x, m):
    return (x + m - 1) // m * m


def _cdiv(a, b):
    return -(-a // b)


def autoencoder_kernel(x_ref,
                       w1_ref, b1_ref, w2_ref, b2_ref, w3_ref, b3_ref,
                       w4_ref, b4_ref, w5_ref, b5_ref, w6_ref, b6_ref,
                       sel_ref, out_ref):
    """One batch tile of the autoencoder forward pass, packed output."""
    compute_dtype = w1_ref.dtype  # bf16 or f32 MXU operands

    def layer(a, w_ref, b_ref, relu=True):
        y = jnp.dot(a.astype(compute_dtype), w_ref[...],
                    preferred_element_type=jnp.float32) + b_ref[...]
        return jnp.maximum(y, 0.0) if relu else y

    x = x_ref[...]

    # ---- encoder ----
    h1 = layer(x, w1_ref, b1_ref)
    # Dropout(p=0.5) -> identity in eval mode.
    # TODO(synk): training-mode Dropout(0.5) via pltpu.prng_random_bits not implemented.
    h2 = layer(h1, w2_ref, b2_ref)
    enc = layer(h2, w3_ref, b3_ref)                 # [TB, h3] true width

    # ---- decoder ----
    d1 = layer(enc, w4_ref, b4_ref)
    d2 = layer(d1, w5_ref, b5_ref)
    dec = layer(d2, w6_ref, b6_ref, relu=False)     # [TB, 128]; cols >= input_dim are zero

    # Pack enc into lanes [input_dim, input_dim + h3) via a tiny selector matmul
    # (MXU has massive slack); keeps the output store a single unmasked 128-wide vst.
    packed = dec + jnp.dot(enc.astype(compute_dtype), sel_ref[...],
                           preferred_element_type=jnp.float32)
    out_ref[...] = packed.astype(out_ref.dtype)


def autoencoder_forward(x, params, *, batch_tile=2048,
                        compute_dtype=jnp.float32, out_dtype=jnp.float32,
                        training=False):
    """x: [B, input_dim] float32.
    params: dict of w{i} (pre-transposed to [in, out]) and b{i} ([1, out]).
    Returns (decoded [B, input_dim], encoded [B, h3])."""
    if training:
        # TODO(synk): training-mode dropout path not implemented (eval-mode only).
        raise NotImplementedError("only eval-mode (inference) forward is implemented")

    B, input_dim = x.shape
    h3 = params["w3"].shape[1]  # bottleneck width
    assert input_dim + h3 <= LANE, "packed output requires input_dim + h3 <= 128"

    # ---- batch tiling: near-divisor tile, ceil-div grid (partial edge block, no pad) ----
    tb = max(8, _round_up(min(batch_tile, B), 8))
    num_tiles = _cdiv(B, tb)
    if num_tiles == 1 and B >= 1024:
        num_tiles = 2                      # let v7x megacore use both TCs (no-op on v5e/v6e)
    tb = max(8, _round_up(_cdiv(B, num_tiles), 8))
    num_tiles = _cdiv(B, tb)

    # ---- weight prep (tiny, one-time): pad final layer to 128 lanes, build selector ----
    w = {f"w{i}": params[f"w{i}"].astype(compute_dtype) for i in range(1, 7)}
    b = {f"b{i}": params[f"b{i}"].astype(jnp.float32) for i in range(1, 7)}
    w["w6"] = jnp.pad(w["w6"], ((0, 0), (0, LANE - input_dim)))   # zero cols -> inert
    b["b6"] = jnp.pad(b["b6"], ((0, 0), (0, LANE - input_dim)))
    sel = jnp.zeros((h3, LANE), compute_dtype)
    sel = sel.at[jnp.arange(h3), input_dim + jnp.arange(h3)].set(1)

    # x stays in its input dtype; the in-kernel astype(compute_dtype) is free (VALU slack).
    flat = [x]
    in_specs = [pl.BlockSpec((tb, input_dim), lambda i: (i, 0))]
    for n in range(1, 7):
        wn, bn = w[f"w{n}"], b[f"b{n}"]
        flat += [wn, bn]
        # Constant index_map -> weights/biases stay resident in VMEM across steps.
        in_specs += [pl.BlockSpec(wn.shape, lambda i: (0, 0)),
                     pl.BlockSpec(bn.shape, lambda i: (0, 0))]
    flat.append(sel)
    in_specs.append(pl.BlockSpec(sel.shape, lambda i: (0, 0)))

    out_shape = jax.ShapeDtypeStruct((B, LANE), out_dtype)
    out_spec = pl.BlockSpec((tb, LANE), lambda i: (i, 0))

    # Advisory cost estimate (HBM/overhead-bound kernel; helps XLA schedule neighbors).
    flops = 2 * B * (sum(w[f"w{n}"].shape[0] * w[f"w{n}"].shape[1] for n in range(1, 7))
                     + h3 * LANE)
    bytes_accessed = (x.size * x.dtype.itemsize
                      + B * LANE * jnp.dtype(out_dtype).itemsize
                      + sum(int(a.size) * a.dtype.itemsize for a in flat[1:]))

    packed = pl.pallas_call(
        autoencoder_kernel,
        grid_spec=pltpu.PrefetchScalarGridSpec(
            num_scalar_prefetch=0,
            grid=(num_tiles,),
            in_specs=in_specs,
            out_specs=out_spec,
        ),
        out_shape=out_shape,
        compiler_params=pltpu.CompilerParams(
            # Batch axis is independent -> shard across TCs on v7x megacore.
            dimension_semantics=("parallel",),
        ),
        cost_estimate=pl.CostEstimate(flops=flops, transcendentals=0,
                                      bytes_accessed=bytes_accessed),
    )(*flat)

    dec = packed[:, :input_dim]
    enc = packed[:, input_dim:input_dim + h3]
    return dec, enc


def init_params(key, input_dim, h1=64, h2=32, h3=16):
    """Init mirroring the PyTorch module's layer shapes.
    Weights stored as [in, out] (pre-transposed), biases as [1, out]."""
    dims = [(input_dim, h1), (h1, h2), (h2, h3),   # encoder
            (h3, h2), (h2, h1), (h1, input_dim)]   # decoder
    params = {}
    keys = jax.random.split(key, len(dims))
    for i, ((din, dout), k) in enumerate(zip(dims, keys), start=1):
        bound = 1.0 / jnp.sqrt(jnp.float32(din))
        kw, kb = jax.random.split(k)
        params[f"w{i}"] = jax.random.uniform(kw, (din, dout), jnp.float32,
                                             minval=-bound, maxval=bound)
        params[f"b{i}"] = jax.random.uniform(kb, (1, dout), jnp.float32,
                                             minval=-bound, maxval=bound)
    return params


def reference_forward(x, params):
    """Pure-JAX f32 reference for correctness check (eval-mode dropout)."""
    h = jnp.maximum(x @ params["w1"] + params["b1"], 0.0)
    h = jnp.maximum(h @ params["w2"] + params["b2"], 0.0)
    enc = jnp.maximum(h @ params["w3"] + params["b3"], 0.0)
    d = jnp.maximum(enc @ params["w4"] + params["b4"], 0.0)
    d = jnp.maximum(d @ params["w5"] + params["b5"], 0.0)
    dec = d @ params["w6"] + params["b6"]
    return dec, enc


if __name__ == "__main__":
    key = jax.random.PRNGKey(0)
    k_x, k_p, k_x2, k_x3 = jax.random.split(key, 4)

    input_dim = 32
    params = init_params(k_p, input_dim)

    # --- small shape (B=8), f32 path, single grid step, full-array blocks ---
    x = jax.random.normal(k_x, (8, input_dim), dtype=jnp.float32)
    dec, enc = jax.block_until_ready(autoencoder_forward(x, params))
    dec_r, enc_r = reference_forward(x, params)
    assert dec.shape == (8, input_dim) and enc.shape == (8, 16)
    assert jnp.allclose(dec, dec_r, atol=1e-5, rtol=1e-5)
    assert jnp.allclose(enc, enc_r, atol=1e-5, rtol=1e-5)

    # --- multi-tile grid with a partial edge block (B=300, tb≈104 -> 3 tiles), f32 ---
    x2 = jax.random.normal(k_x2, (300, input_dim), dtype=jnp.float32)
    dec2, enc2 = jax.block_until_ready(
        autoencoder_forward(x2, params, batch_tile=128))
    dec2_r, enc2_r = reference_forward(x2, params)
    assert dec2.shape == (300, input_dim) and enc2.shape == (300, 16)
    assert jnp.allclose(dec2, dec2_r, atol=1e-5, rtol=1e-5)
    assert jnp.allclose(enc2, enc2_r, atol=1e-5, rtol=1e-5)

    # --- default tiling path with forced 2 tiles (B=1200 -> 2 x 600), f32 ---
    x3 = jax.random.normal(k_x3, (1200, input_dim), dtype=jnp.float32)
    dec3, enc3 = jax.block_until_ready(autoencoder_forward(x3, params))
    dec3_r, enc3_r = reference_forward(x3, params)
    assert jnp.allclose(dec3, dec3_r, atol=1e-5, rtol=1e-5)
    assert jnp.allclose(enc3, enc3_r, atol=1e-5, rtol=1e-5)

    # --- bf16 MXU operands + bf16 packed output (f32 accumulation), looser tolerance ---
    dec4, enc4 = jax.block_until_ready(
        autoencoder_forward(x2, params, batch_tile=128,
                            compute_dtype=jnp.bfloat16, out_dtype=jnp.bfloat16))
    assert jnp.allclose(dec4.astype(jnp.float32), dec2_r, atol=5e-2, rtol=5e-2)
    assert jnp.allclose(enc4.astype(jnp.float32), enc2_r, atol=5e-2, rtol=5e-2)

    print("KERNEL_OK")
</pallas_src>

<mosaic_0001>
module attributes {stable_mosaic.version = 11 : i64} {
  func.func @autoencoder_kernel(%arg0: i32, %arg1: memref<8x32xf32, #tpu.memory_space<vmem>>, %arg2: memref<32x64xf32, #tpu.memory_space<vmem>>, %arg3: memref<1x64xf32, #tpu.memory_space<vmem>>, %arg4: memref<64x32xf32, #tpu.memory_space<vmem>>, %arg5: memref<1x32xf32, #tpu.memory_space<vmem>>, %arg6: memref<32x16xf32, #tpu.memory_space<vmem>>, %arg7: memref<1x16xf32, #tpu.memory_space<vmem>>, %arg8: memref<16x32xf32, #tpu.memory_space<vmem>>, %arg9: memref<1x32xf32, #tpu.memory_space<vmem>>, %arg10: memref<32x64xf32, #tpu.memory_space<vmem>>, %arg11: memref<1x64xf32, #tpu.memory_space<vmem>>, %arg12: memref<64x128xf32, #tpu.memory_space<vmem>>, %arg13: memref<1x128xf32, #tpu.memory_space<vmem>>, %arg14: memref<16x128xf32, #tpu.memory_space<vmem>>, %arg15: memref<8x128xf32, #tpu.memory_space<vmem>>) attributes {dimension_semantics = [#tpu.dimension_semantics<parallel>], iteration_bounds = array<i64: 1>, scalar_prefetch = 0 : i64, scratch_operands = 0 : i64, tpu.core_type = #tpu.core_type<tc>, window_params = [{transform_indices = @transform_0, window_bounds = array<i64: 8, 32>}, {pipeline_mode = #tpu.pipeline_mode<synchronous>, transform_indices = @transform_1, window_bounds = array<i64: 32, 64>}, {pipeline_mode = #tpu.pipeline_mode<synchronous>, transform_indices = @transform_2, window_bounds = array<i64: 1, 64>}, {pipeline_mode = #tpu.pipeline_mode<synchronous>, transform_indices = @transform_3, window_bounds = array<i64: 64, 32>}, {pipeline_mode = #tpu.pipeline_mode<synchronous>, transform_indices = @transform_4, window_bounds = array<i64: 1, 32>}, {pipeline_mode = #tpu.pipeline_mode<synchronous>, transform_indices = @transform_5, window_bounds = array<i64: 32, 16>}, {pipeline_mode = #tpu.pipeline_mode<synchronous>, transform_indices = @transform_6, window_bounds = array<i64: 1, 16>}, {pipeline_mode = #tpu.pipeline_mode<synchronous>, transform_indices = @transform_7, window_bounds = array<i64: 16, 32>}, {pipeline_mode = #tpu.pipeline_mode<synchronous>, transform_indices = @transform_8, window_bounds = array<i64: 1, 32>}, {pipeline_mode = #tpu.pipeline_mode<synchronous>, transform_indices = @transform_9, window_bounds = array<i64: 32, 64>}, {pipeline_mode = #tpu.pipeline_mode<synchronous>, transform_indices = @transform_10, window_bounds = array<i64: 1, 64>}, {pipeline_mode = #tpu.pipeline_mode<synchronous>, transform_indices = @transform_11, window_bounds = array<i64: 64, 128>}, {pipeline_mode = #tpu.pipeline_mode<synchronous>, transform_indices = @transform_12, window_bounds = array<i64: 1, 128>}, {pipeline_mode = #tpu.pipeline_mode<synchronous>, transform_indices = @transform_13, window_bounds = array<i64: 16, 128>}, {transform_indices = @transform_14, window_bounds = array<i64: 8, 128>}]} {
    %c0 = arith.constant 0 : index
    %c0_0 = arith.constant 0 : index
    %0 = vector.load %arg1[%c0, %c0_0] : memref<8x32xf32, #tpu.memory_space<vmem>>, vector<8x32xf32>
    %c0_1 = arith.constant 0 : index
    %c0_2 = arith.constant 0 : index
    %1 = vector.load %arg2[%c0_1, %c0_2] : memref<32x64xf32, #tpu.memory_space<vmem>>, vector<32x64xf32>
    %cst = arith.constant dense<0.000000e+00> : vector<8x64xf32>
    %2 = tpu.matmul %0, %1, %cst {dimension_numbers = #tpu.dot_dimension_numbers<[1], [0], [0], [1], [0, 0, 1, 1], [], []>} : vector<8x32xf32>, vector<32x64xf32>, vector<8x64xf32> -> vector<8x64xf32>
    %c0_3 = arith.constant 0 : index
    %c0_4 = arith.constant 0 : index
    %3 = vector.load %arg3[%c0_3, %c0_4] : memref<1x64xf32, #tpu.memory_space<vmem>>, vector<1x64xf32>
    %4 = vector.broadcast %3 : vector<1x64xf32> to vector<8x64xf32>
    %5 = arith.addf %2, %4 : vector<8x64xf32>
    %cst_5 = arith.constant 0.000000e+00 : f32
    %6 = vector.broadcast %cst_5 : f32 to vector<8x64xf32>
    %7 = arith.maximumf %5, %6 : vector<8x64xf32>
    %c0_6 = arith.constant 0 : index
    %c0_7 = arith.constant 0 : index
    %8 = vector.load %arg4[%c0_6, %c0_7] : memref<64x32xf32, #tpu.memory_space<vmem>>, vector<64x32xf32>
    %cst_8 = arith.constant dense<0.000000e+00> : vector<8x32xf32>
    %9 = tpu.matmul %7, %8, %cst_8 {dimension_numbers = #tpu.dot_dimension_numbers<[1], [0], [0], [1], [0, 0, 1, 1], [], []>} : vector<8x64xf32>, vector<64x32xf32>, vector<8x32xf32> -> vector<8x32xf32>
    %c0_9 = arith.constant 0 : index
    %c0_10 = arith.constant 0 : index
    %10 = vector.load %arg5[%c0_9, %c0_10] : memref<1x32xf32, #tpu.memory_space<vmem>>, vector<1x32xf32>
    %11 = vector.broadcast %10 : vector<1x32xf32> to vector<8x32xf32>
    %12 = arith.addf %9, %11 : vector<8x32xf32>
    %cst_11 = arith.constant 0.000000e+00 : f32
    %13 = vector.broadcast %cst_11 : f32 to vector<8x32xf32>
    %14 = arith.maximumf %12, %13 : vector<8x32xf32>
    %c0_12 = arith.constant 0 : index
    %c0_13 = arith.constant 0 : index
    %15 = vector.load %arg6[%c0_12, %c0_13] : memref<32x16xf32, #tpu.memory_space<vmem>>, vector<32x16xf32>
    %cst_14 = arith.constant dense<0.000000e+00> : vector<8x16xf32>
    %16 = tpu.matmul %14, %15, %cst_14 {dimension_numbers = #tpu.dot_dimension_numbers<[1], [0], [0], [1], [0, 0, 1, 1], [], []>} : vector<8x32xf32>, vector<32x16xf32>, vector<8x16xf32> -> vector<8x16xf32>
    %c0_15 = arith.constant 0 : index
    %c0_16 = arith.constant 0 : index
    %17 = vector.load %arg7[%c0_15, %c0_16] : memref<1x16xf32, #tpu.memory_space<vmem>>, vector<1x16xf32>
    %18 = vector.broadcast %17 : vector<1x16xf32> to vector<8x16xf32>
    %19 = arith.addf %16, %18 : vector<8x16xf32>
    %cst_17 = arith.constant 0.000000e+00 : f32
    %20 = vector.broadcast %cst_17 : f32 to vector<8x16xf32>
    %21 = arith.maximumf %19, %20 : vector<8x16xf32>
    %c0_18 = arith.constant 0 : index
    %c0_19 = arith.constant 0 : index
    %22 = vector.load %arg8[%c0_18, %c0_19] : memref<16x32xf32, #tpu.memory_space<vmem>>, vector<16x32xf32>
    %cst_20 = arith.constant dense<0.000000e+00> : vector<8x32xf32>
    %23 = tpu.matmul %21, %22, %cst_20 {dimension_numbers = #tpu.dot_dimension_numbers<[1], [0], [0], [1], [0, 0, 1, 1], [], []>} : vector<8x16xf32>, vector<16x32xf32>, vector<8x32xf32> -> vector<8x32xf32>
    %c0_21 = arith.constant 0 : index
    %c0_22 = arith.constant 0 : index
    %24 = vector.load %arg9[%c0_21, %c0_22] : memref<1x32xf32, #tpu.memory_space<vmem>>, vector<1x32xf32>
    %25 = vector.broadcast %24 : vector<1x32xf32> to vector<8x32xf32>
    %26 = arith.addf %23, %25 : vector<8x32xf32>
    %cst_23 = arith.constant 0.000000e+00 : f32
    %27 = vector.broadcast %cst_23 : f32 to vector<8x32xf32>
    %28 = arith.maximumf %26, %27 : vector<8x32xf32>
    %c0_24 = arith.constant 0 : index
    %c0_25 = arith.constant 0 : index
    %29 = vector.load %arg10[%c0_24, %c0_25] : memref<32x64xf32, #tpu.memory_space<vmem>>, vector<32x64xf32>
    %cst_26 = arith.constant dense<0.000000e+00> : vector<8x64xf32>
    %30 = tpu.matmul %28, %29, %cst_26 {dimension_numbers = #tpu.dot_dimension_numbers<[1], [0], [0], [1], [0, 0, 1, 1], [], []>} : vector<8x32xf32>, vector<32x64xf32>, vector<8x64xf32> -> vector<8x64xf32>
    %c0_27 = arith.constant 0 : index
    %c0_28 = arith.constant 0 : index
    %31 = vector.load %arg11[%c0_27, %c0_28] : memref<1x64xf32, #tpu.memory_space<vmem>>, vector<1x64xf32>
    %32 = vector.broadcast %31 : vector<1x64xf32> to vector<8x64xf32>
    %33 = arith.addf %30, %32 : vector<8x64xf32>
    %cst_29 = arith.constant 0.000000e+00 : f32
    %34 = vector.broadcast %cst_29 : f32 to vector<8x64xf32>
    %35 = arith.maximumf %33, %34 : vector<8x64xf32>
    %c0_30 = arith.constant 0 : index
    %c0_31 = arith.constant 0 : index
    %36 = vector.load %arg12[%c0_30, %c0_31] : memref<64x128xf32, #tpu.memory_space<vmem>>, vector<64x128xf32>
    %cst_32 = arith.constant dense<0.000000e+00> : vector<8x128xf32>
    %37 = tpu.matmul %35, %36, %cst_32 {dimension_numbers = #tpu.dot_dimension_numbers<[1], [0], [0], [1], [0, 0, 1, 1], [], []>} : vector<8x64xf32>, vector<64x128xf32>, vector<8x128xf32> -> vector<8x128xf32>
    %c0_33 = arith.constant 0 : index
    %c0_34 = arith.constant 0 : index
    %38 = vector.load %arg13[%c0_33, %c0_34] : memref<1x128xf32, #tpu.memory_space<vmem>>, vector<1x128xf32>
    %39 = vector.broadcast %38 : vector<1x128xf32> to vector<8x128xf32>
    %40 = arith.addf %37, %39 : vector<8x128xf32>
    %c0_35 = arith.constant 0 : index
    %c0_36 = arith.constant 0 : index
    %41 = vector.load %arg14[%c0_35, %c0_36] : memref<16x128xf32, #tpu.memory_space<vmem>>, vector<16x128xf32>
    %cst_37 = arith.constant dense<0.000000e+00> : vector<8x128xf32>
    %42 = tpu.matmul %21, %41, %cst_37 {dimension_numbers = #tpu.dot_dimension_numbers<[1], [0], [0], [1], [0, 0, 1, 1], [], []>} : vector<8x16xf32>, vector<16x128xf32>, vector<8x128xf32> -> vector<8x128xf32>
    %43 = arith.addf %40, %42 : vector<8x128xf32>
    %c0_38 = arith.constant 0 : index
    %c0_39 = arith.constant 0 : index
    %44 = vector.load %arg15[%c0_38, %c0_39] : memref<8x128xf32, #tpu.memory_space<vmem>>, vector<8x128xf32>
    tpu.vector_store %arg15[%c0_38, %c0_39], %43 {strides = array<i32>} : memref<8x128xf32, #tpu.memory_space<vmem>>, vector<8x128xf32>,
    return
  }
  func.func @transform_0(%arg0: i32) -> (i32, i32) {
    %c0_i32 = arith.constant 0 : i32
    %c0_i32_0 = arith.constant 0 : i32
    return %arg0, %c0_i32 : i32, i32
  }
  func.func @transform_1(%arg0: i32) -> (i32, i32) {
    %c0_i32 = arith.constant 0 : i32
    %c0_i32_0 = arith.constant 0 : i32
    %c0_i32_1 = arith.constant 0 : i32
    return %c0_i32, %c0_i32_0 : i32, i32
  }
  func.func @transform_2(%arg0: i32) -> (i32, i32) {
    %c0_i32 = arith.constant 0 : i32
    %c0_i32_0 = arith.constant 0 : i32
    %c0_i32_1 = arith.constant 0 : i32
    return %c0_i32, %c0_i32_0 : i32, i32
  }
  func.func @transform_3(%arg0: i32) -> (i32, i32) {
    %c0_i32 = arith.constant 0 : i32
    %c0_i32_0 = arith.constant 0 : i32
    %c0_i32_1 = arith.constant 0 : i32
    return %c0_i32, %c0_i32_0 : i32, i32
  }
  func.func @transform_4(%arg0: i32) -> (i32, i32) {
    %c0_i32 = arith.constant 0 : i32
    %c0_i32_0 = arith.constant 0 : i32
    %c0_i32_1 = arith.constant 0 : i32
    return %c0_i32, %c0_i32_0 : i32, i32
  }
  func.func @transform_5(%arg0: i32) -> (i32, i32) {
    %c0_i32 = arith.constant 0 : i32
    %c0_i32_0 = arith.constant 0 : i32
    %c0_i32_1 = arith.constant 0 : i32
    return %c0_i32, %c0_i32_0 : i32, i32
  }
  func.func @transform_6(%arg0: i32) -> (i32, i32) {
    %c0_i32 = arith.constant 0 : i32
    %c0_i32_0 = arith.constant 0 : i32
    %c0_i32_1 = arith.constant 0 : i32
    return %c0_i32, %c0_i32_0 : i32, i32
  }
  func.func @transform_7(%arg0: i32) -> (i32, i32) {
    %c0_i32 = arith.constant 0 : i32
    %c0_i32_0 = arith.constant 0 : i32
    %c0_i32_1 = arith.constant 0 : i32
    return %c0_i32, %c0_i32_0 : i32, i32
  }
  func.func @transform_8(%arg0: i32) -> (i32, i32) {
    %c0_i32 = arith.constant 0 : i32
    %c0_i32_0 = arith.constant 0 : i32
    %c0_i32_1 = arith.constant 0 : i32
    return %c0_i32, %c0_i32_0 : i32, i32
  }
  func.func @transform_9(%arg0: i32) -> (i32, i32) {
    %c0_i32 = arith.constant 0 : i32
    %c0_i32_0 = arith.constant 0 : i32
    %c0_i32_1 = arith.constant 0 : i32
    return %c0_i32, %c0_i32_0 : i32, i32
  }
  func.func @transform_10(%arg0: i32) -> (i32, i32) {
    %c0_i32 = arith.constant 0 : i32
    %c0_i32_0 = arith.constant 0 : i32
    %c0_i32_1 = arith.constant 0 : i32
    return %c0_i32, %c0_i32_0 : i32, i32
  }
  func.func @transform_11(%arg0: i32) -> (i32, i32) {
    %c0_i32 = arith.constant 0 : i32
    %c0_i32_0 = arith.constant 0 : i32
    %c0_i32_1 = arith.constant 0 : i32
    return %c0_i32, %c0_i32_0 : i32, i32
  }
  func.func @transform_12(%arg0: i32) -> (i32, i32) {
    %c0_i32 = arith.constant 0 : i32
    %c0_i32_0 = arith.constant 0 : i32
    %c0_i32_1 = arith.constant 0 : i32
    return %c0_i32, %c0_i32_0 : i32, i32
  }
  func.func @transform_13(%arg0: i32) -> (i32, i32) {
    %c0_i32 = arith.constant 0 : i32
    %c0_i32_0 = arith.constant 0 : i32
    %c0_i32_1 = arith.constant 0 : i32
    return %c0_i32, %c0_i32_0 : i32, i32
  }
  func.func @transform_14(%arg0: i32) -> (i32, i32) {
    %c0_i32 = arith.constant 0 : i32
    %c0_i32_0 = arith.constant 0 : i32
    return %arg0, %c0_i32 : i32, i32
  }
}

</mosaic_0001>

<llo_original>
// kernel: tpu_custom_call.1
$region0: #{tpu_custom_call.1}
  #allocation0 [shape = 'u32[]', space=smem, size = 0x4, offset = 0x4, fixed_abs, tag = 'smem constant byte address 0x4 - core index']
  #allocation1 [shape = 'u32[144,128]{1,0:T(1,128)}', space=vmem, size = 0x12000, scoped, tag = 'internal scratch']
  %s0 = inlined_call_operand.hbm [shape: f32[8,32], index: 0, kind: input, shape index: {}]
  %s1 = inlined_call_operand.vmem [shape: f32[32,64], index: 1, kind: input, shape index: {}]
  %s2 = inlined_call_operand.vmem [shape: f32[1,64], index: 2, kind: input, shape index: {}]
  %s3 = inlined_call_operand.vmem [shape: f32[64,32], index: 3, kind: input, shape index: {}]
  %s4 = inlined_call_operand.vmem [shape: f32[1,32], index: 4, kind: input, shape index: {}]
  %s5 = inlined_call_operand.vmem [shape: f32[32,16], index: 5, kind: input, shape index: {}]
  %s6 = inlined_call_operand.hbm [shape: f32[1,16], index: 6, kind: input, shape index: {}]
  %s7 = inlined_call_operand.hbm [shape: f32[16,32], index: 7, kind: input, shape index: {}]
  %s8 = inlined_call_operand.hbm [shape: f32[1,32], index: 8, kind: input, shape index: {}]
  %s9 = inlined_call_operand.vmem [shape: f32[32,64], index: 9, kind: input, shape index: {}]
  %s10 = inlined_call_operand.vmem [shape: f32[1,64], index: 10, kind: input, shape index: {}]
  %s11 = inlined_call_operand.vmem [shape: f32[64,128], index: 11, kind: input, shape index: {}]
  %s12 = inlined_call_operand.vmem [shape: f32[1,128], index: 12, kind: input, shape index: {}]
  %s13 = inlined_call_operand.vmem [shape: f32[16,128], index: 13, kind: input, shape index: {}]
  %s14 = inlined_call_operand.hbm [shape: f32[8,128], index: 14, kind: output, shape index: {}]
  %s15 = sld [smem:[#allocation0]]
  $region82: #{tpu_custom_call.1} parent=0
    _
  %s17 = ssub.s32 1, %s15
  %s18 = scalar_select 0, %s17, %s15
  $region1: #{tpu_custom_call.1} parent=0
    #allocation2 [shape = 'u8[4096]{0}', space=vmem, size = 0x1000, scoped, tag = 'input window, operand 0, single buffered']
    #allocation3 [shape = 's32[1]{0}', space=sflag, size = 0x4, scoped, tag = 'scoped memory for tpu_custom_call.1']
    #allocation4 [shape = 's32[1]{0}', space=sflag, size = 0x4, scoped, tag = 'scoped memory for tpu_custom_call.1']
    #allocation5 [shape = 'u8[512]{0}', space=vmem, size = 0x400, scoped, tag = 'input window, operand 6, single buffered']
    #allocation6 [shape = 's32[1]{0}', space=sflag, size = 0x4, scoped, tag = 'scoped memory for tpu_custom_call.1']
    #allocation7 [shape = 'u8[8192]{0}', space=vmem, size = 0x2000, scoped, tag = 'input window, operand 7, single buffered']
    #allocation8 [shape = 'u8[512]{0}', space=vmem, size = 0x400, scoped, tag = 'input window, operand 8, single buffered']
    #allocation9 [shape = 's32[1]{0}', space=sflag, size = 0x4, scoped, tag = 'scoped memory for tpu_custom_call.1']
    #allocation10 [shape = 'u8[4096]{0}', space=vmem, size = 0x1000, scoped, tag = 'output window, operand 0, single buffered']
    %19 = vsyncpa [#allocation3], 0
    %20 = vsyncpa [#allocation6], 0
    %21 = vsyncpa [#allocation9], 0
    %22 = vsyncpa [#allocation4], 0
    // Predicated region
    $region2: #{tpu_custom_call.1} parent=1 // pred_check
      _
    $region3: #{tpu_custom_call.1} parent=1 // pred_check_branch
      %24 = sbr.rel (0) target = $region5
    $region4: #{tpu_custom_call.1} parent=1 // pred_region
      %s26 = ssub.s32 128, 128
      %27 = vsyncadd [#allocation3], %s26
      %s29 = sshll.u32 [#allocation2], 4
      %s30 = int_to_ptr.vmem [resolvable:$true] %s29
      %32 = dma.hbm_to_vmem [thread:$0]  %s0, 128, %s30, [#allocation3]
    $region5: #{tpu_custom_call.1} parent=1 // pred_fallthru
      _
    // Predicated region
    $region6: #{tpu_custom_call.1} parent=1 // pred_check
      _
    $region7: #{tpu_custom_call.1} parent=1 // pred_check_branch
      %34 = sbr.rel (0) target = $region9
    $region8: #{tpu_custom_call.1} parent=1 // pred_region
      _
    $region9: #{tpu_custom_call.1} parent=1 // pred_fallthru
      _
    // Predicated region
    $region10: #{tpu_custom_call.1} parent=1 // pred_check
      _
    $region11: #{tpu_custom_call.1} parent=1 // pred_check_branch
      %36 = sbr.rel (0) target = $region13
    $region12: #{tpu_custom_call.1} parent=1 // pred_region
      _
    $region13: #{tpu_custom_call.1} parent=1 // pred_fallthru
      _
    // Predicated region
    $region14: #{tpu_custom_call.1} parent=1 // pred_check
      _
    $region15: #{tpu_custom_call.1} parent=1 // pred_check_branch
      %38 = sbr.rel (0) target = $region17
    $region16: #{tpu_custom_call.1} parent=1 // pred_region
      _
    $region17: #{tpu_custom_call.1} parent=1 // pred_fallthru
      _
    // Predicated region
    $region18: #{tpu_custom_call.1} parent=1 // pred_check
      _
    $region19: #{tpu_custom_call.1} parent=1 // pred_check_branch
      %40 = sbr.rel (0) target = $region21
    $region20: #{tpu_custom_call.1} parent=1 // pred_region
      _
    $region21: #{tpu_custom_call.1} parent=1 // pred_fallthru
      _
    // Predicated region
    $region22: #{tpu_custom_call.1} parent=1 // pred_check
      _
    $region23: #{tpu_custom_call.1} parent=1 // pred_check_branch
      %42 = sbr.rel (0) target = $region25
    $region24: #{tpu_custom_call.1} parent=1 // pred_region
      _
    $region25: #{tpu_custom_call.1} parent=1 // pred_fallthru
      _
    // Predicated region
    $region26: #{tpu_custom_call.1} parent=1 // pred_check
      _
    $region27: #{tpu_custom_call.1} parent=1 // pred_check_branch
      %44 = sbr.rel (0) target = $region29
    $region28: #{tpu_custom_call.1} parent=1 // pred_region
      %s46 = ssub.s32 16, 16
      %47 = vsyncadd [#allocation6], %s46
      %s49 = sshll.u32 [#allocation5], 4
      %s50 = int_to_ptr.vmem [resolvable:$true] %s49
      %52 = dma.hbm_to_vmem [thread:$0]  %s6, 16, %s50, [#allocation6]
    $region29: #{tpu_custom_call.1} parent=1 // pred_fallthru
      _
    // Predicated region
    $region30: #{tpu_custom_call.1} parent=1 // pred_check
      _
    $region31: #{tpu_custom_call.1} parent=1 // pred_check_branch
      %54 = sbr.rel (0) target = $region33
    $region32: #{tpu_custom_call.1} parent=1 // pred_region
      %s56 = ssub.s32 256, 256
      %57 = vsyncadd [#allocation6], %s56
      %s58 = sshll.u32 [#allocation7], 4
      %s59 = int_to_ptr.vmem [resolvable:$true] %s58
      %64 = dma.hbm_to_vmem [thread:$0]  %s7, 256, %s59, [#allocation6], 128, 128, 8
    $region33: #{tpu_custom_call.1} parent=1 // pred_fallthru
      _
    // Predicated region
    $region34: #{tpu_custom_call.1} parent=1 // pred_check
      _
    $region35: #{tpu_custom_call.1} parent=1 // pred_check_branch
      %66 = sbr.rel (0) target = $region37
    $region36: #{tpu_custom_call.1} parent=1 // pred_region
      %s68 = ssub.s32 16, 16
      %69 = vsyncadd [#allocation9], %s68
      %s71 = sshll.u32 [#allocation8], 4
      %s72 = int_to_ptr.vmem [resolvable:$true] %s71
      %74 = dma.hbm_to_vmem [thread:$0]  %s8, 16, %s72, [#allocation9]
    $region37: #{tpu_custom_call.1} parent=1 // pred_fallthru
      _
    // Predicated region
    $region38: #{tpu_custom_call.1} parent=1 // pred_check
      _
    $region39: #{tpu_custom_call.1} parent=1 // pred_check_branch
      %76 = sbr.rel (0) target = $region41
    $region40: #{tpu_custom_call.1} parent=1 // pred_region
      _
    $region41: #{tpu_custom_call.1} parent=1 // pred_fallthru
      _
    // Predicated region
    $region42: #{tpu_custom_call.1} parent=1 // pred_check
      _
    $region43: #{tpu_custom_call.1} parent=1 // pred_check_branch
      %78 = sbr.rel (0) target = $region45
    $region44: #{tpu_custom_call.1} parent=1 // pred_region
      _
    $region45: #{tpu_custom_call.1} parent=1 // pred_fallthru
      _
    // Predicated region
    $region46: #{tpu_custom_call.1} parent=1 // pred_check
      _
    $region47: #{tpu_custom_call.1} parent=1 // pred_check_branch
      %80 = sbr.rel (0) target = $region49
    $region48: #{tpu_custom_call.1} parent=1 // pred_region
      _
    $region49: #{tpu_custom_call.1} parent=1 // pred_fallthru
      _
    // Predicated region
    $region50: #{tpu_custom_call.1} parent=1 // pred_check
      _
    $region51: #{tpu_custom_call.1} parent=1 // pred_check_branch
      %82 = sbr.rel (0) target = $region53
    $region52: #{tpu_custom_call.1} parent=1 // pred_region
      _
    $region53: #{tpu_custom_call.1} parent=1 // pred_fallthru
      _
    // Predicated region
    $region54: #{tpu_custom_call.1} parent=1 // pred_check
      _
    $region55: #{tpu_custom_call.1} parent=1 // pred_check_branch
      %84 = sbr.rel (0) target = $region57
    $region56: #{tpu_custom_call.1} parent=1 // pred_region
      _
    $region57: #{tpu_custom_call.1} parent=1 // pred_fallthru
      _
    // Predicated region
    $region58: #{tpu_custom_call.1} parent=1 // pred_check
      _
    $region59: #{tpu_custom_call.1} parent=1 // pred_check_branch
      %86 = sbr.rel (0) target = $region61
    $region60: #{tpu_custom_call.1} parent=1 // pred_region
      %87 = dma.done [#allocation3], 128
    $region61: #{tpu_custom_call.1} parent=1 // pred_fallthru
      _
    // Predicated region
    $region62: #{tpu_custom_call.1} parent=1 // pred_check
      _
    $region63: #{tpu_custom_call.1} parent=1 // pred_check_branch
      %89 = sbr.rel (0) target = $region65
    $region64: #{tpu_custom_call.1} parent=1 // pred_region
      %90 = dma.done [#allocation6], 16
    $region65: #{tpu_custom_call.1} parent=1 // pred_fallthru
      _
    // Predicated region
    $region66: #{tpu_custom_call.1} parent=1 // pred_check
      _
    $region67: #{tpu_custom_call.1} parent=1 // pred_check_branch
      %92 = sbr.rel (0) target = $region69
    $region68: #{tpu_custom_call.1} parent=1 // pred_region
      %93 = dma.done [#allocation6], 256
    $region69: #{tpu_custom_call.1} parent=1 // pred_fallthru
      _
    // Predicated region
    $region70: #{tpu_custom_call.1} parent=1 // pred_check
      _
    $region71: #{tpu_custom_call.1} parent=1 // pred_check_branch
      %95 = sbr.rel (0) target = $region73
    $region72: #{tpu_custom_call.1} parent=1 // pred_region
      %96 = dma.done [#allocation9], 16
    $region73: #{tpu_custom_call.1} parent=1 // pred_fallthru
      _
    %v97 = vld [vmem:[#allocation2] sm:$0xff]
    %v98 = vld [vmem:[%s1] sm:$0xff]
    %v99 = vld [vmem:[%s1 + $0x8] sm:$0xff]
    %v100 = vld [vmem:[%s1 + $0x10] sm:$0xff]
    %v101 = vld [vmem:[%s1 + $0x18] sm:$0xff]
    %v102 = vld [vmem:[%s2] sm:$0x1]
    %v104 = vlaneseq
    %v105 = vshrl.u32 %v104, 7
    %v106 = vsub.s32 0, %v105
    %v107 = vrot.slane %v102, %v106
    %vm109 = vcmask 261120
    %v111 = vsel %vm109, %v97, 0
    %113 = vmatprep.subr.mxu0 0.0
    %114 = vmatpush1.msra.mxu0 %v98
    %115 = vmatprep.subr.mxu0 0.0
    %116 = vmatpush1.msra.mxu0 %v99
    %117 = vmatprep.subr.mxu0 0.0
    %118 = vmatpush1.msra.mxu0 %v100
    %119 = vmatprep.subr.mxu0 0.0
    %120 = vmatpush1.msra.mxu0 %v101
    %121 = vmatprep.subr.mxu0 0.0
    %122 = vmatpush1.msra.mxu0 0.0
    %123 = vmatprep.subr.mxu0 0.0
    %124 = vmatpush1.msra.mxu0 0.0
    %125 = vmatprep.subr.mxu0 0.0
    %126 = vmatpush1.msra.mxu0 0.0
    %127 = vmatprep.subr.mxu0 0.0
    %128 = vmatpush1.msra.mxu0 0.0
    %129 = vmatprep.subr.mxu0 0.0
    %130 = vmatpush1.msra.mxu0 0.0
    %131 = vmatprep.subr.mxu0 0.0
    %132 = vmatpush1.msra.mxu0 0.0
    %133 = vmatprep.subr.mxu0 0.0
    %134 = vmatpush1.msra.mxu0 0.0
    %135 = vmatprep.subr.mxu0 0.0
    %136 = vmatpush1.msra.mxu0 0.0
    %137 = vmatprep.subr.mxu0 0.0
    %138 = vmatpush1.msra.mxu0 0.0
    %139 = vmatprep.subr.mxu0 0.0
    %140 = vmatpush1.msra.mxu0 0.0
    %141 = vmatprep.subr.mxu0 0.0
    %142 = vmatpush1.msra.mxu0 0.0
    %143 = vmatprep.subr.mxu0 0.0
    %144 = vmatpush1.msra.mxu0 0.0
    %145 = vmatprep.subr.mxu0 0.0
    %146 = vmatpush1.msra.mxu0 0.0
    %147 = vmatprep.subr.mxu0 0.0
    %148 = vmatpush1.msra.mxu0 0.0
    %149 = vmatprep.subr.mxu0 0.0
    %150 = vmatpush1.msra.mxu0 0.0
    %151 = vmatprep.subr.mxu0 0.0
    %152 = vmatpush1.msra.mxu0 0.0
    %153 = vmatprep.subr.mxu0 0.0
    %154 = vmatpush1.msra.mxu0 0.0
    %155 = vmatprep.subr.mxu0 0.0
    %156 = vmatpush1.msra.mxu0 0.0
    %157 = vmatprep.subr.mxu0 0.0
    %158 = vmatpush1.msra.mxu0 0.0
    %159 = vmatprep.subr.mxu0 0.0
    %160 = vmatpush1.msra.mxu0 0.0
    %161 = vmatprep.subr.mxu0 0.0
    %162 = vmatpush1.msra.mxu0 0.0
    %163 = vmatprep.subr.mxu0 0.0
    %164 = vmatpush1.msra.mxu0 0.0
    %165 = vmatprep.subr.mxu0 0.0
    %166 = vmatpush1.msra.mxu0 0.0
    %167 = vmatprep.subr.mxu0 0.0
    %168 = vmatpush1.msra.mxu0 0.0
    %169 = vmatprep.subr.mxu0 0.0
    %170 = vmatpush1.msra.mxu0 0.0
    %171 = vmatprep.subr.mxu0 0.0
    %172 = vmatpush1.msra.mxu0 0.0
    %173 = vmatprep.subr.mxu0 0.0
    %174 = vmatpush1.msra.mxu0 0.0
    %175 = vmatprep.subr.mxu0 0.0
    %176 = vmatpush1.msra.mxu0 0.0
    %177 = vmatprep.mubr.f32.mxu0 0.0
    %178 = vmatmul.mubr.f32.gmra.mrb[0].mxu0 %v111
    %v179 = vpop.f32.mrb[0].mxu0
    %v180 = vadd.f32 %v107, %v179
    %v181 = vpop.f32.mrb[0].mxu0
    %182 = vdwg.mxu0
    %v183 = vmax.f32 %v180, 0.0
    %v184 = vld [vmem:[%s3] sm:$0xff]
    %v185 = vld [vmem:[%s3 + $0x8] sm:$0xff]
    %v186 = vld [vmem:[%s3 + $0x10] sm:$0xff]
    %v187 = vld [vmem:[%s3 + $0x18] sm:$0xff]
    %v188 = vld [vmem:[%s3 + $0x20] sm:$0xff]
    %v189 = vld [vmem:[%s3 + $0x28] sm:$0xff]
    %v190 = vld [vmem:[%s3 + $0x30] sm:$0xff]
    %v191 = vld [vmem:[%s3 + $0x38] sm:$0xff]
    %v192 = vld [vmem:[%s4] sm:$0x1]
    %v194 = vlaneseq
    %v195 = vshrl.u32 %v194, 7
    %v196 = vsub.s32 0, %v195
    %v197 = vrot.slane %v192, %v196
    %vm199 = vcmask 523264
    %v201 = vsel %vm199, %v183, 0
    %203 = vmatprep.subr.mxu0 0.0
    %204 = vmatpush1.msra.mxu0 %v184
    %205 = vmatprep.subr.mxu0 0.0
    %206 = vmatpush1.msra.mxu0 %v185
    %207 = vmatprep.subr.mxu0 0.0
    %208 = vmatpush1.msra.mxu0 %v186
    %209 = vmatprep.subr.mxu0 0.0
    %210 = vmatpush1.msra.mxu0 %v187
    %211 = vmatprep.subr.mxu0 0.0
    %212 = vmatpush1.msra.mxu0 %v188
    %213 = vmatprep.subr.mxu0 0.0
    %214 = vmatpush1.msra.mxu0 %v189
    %215 = vmatprep.subr.mxu0 0.0
    %216 = vmatpush1.msra.mxu0 %v190
    %217 = vmatprep.subr.mxu0 0.0
    %218 = vmatpush1.msra.mxu0 %v191
    %219 = vmatprep.subr.mxu0 0.0
    %220 = vmatpush1.msra.mxu0 0.0
    %221 = vmatprep.subr.mxu0 0.0
    %222 = vmatpush1.msra.mxu0 0.0
    %223 = vmatprep.subr.mxu0 0.0
    %224 = vmatpush1.msra.mxu0 0.0
    %225 = vmatprep.subr.mxu0 0.0
    %226 = vmatpush1.msra.mxu0 0.0
    %227 = vmatprep.subr.mxu0 0.0
    %228 = vmatpush1.msra.mxu0 0.0
    %229 = vmatprep.subr.mxu0 0.0
    %230 = vmatpush1.msra.mxu0 0.0
    %231 = vmatprep.subr.mxu0 0.0
    %232 = vmatpush1.msra.mxu0 0.0
    %233 = vmatprep.subr.mxu0 0.0
    %234 = vmatpush1.msra.mxu0 0.0
    %235 = vmatprep.subr.mxu0 0.0
    %236 = vmatpush1.msra.mxu0 0.0
    %237 = vmatprep.subr.mxu0 0.0
    %238 = vmatpush1.msra.mxu0 0.0
    %239 = vmatprep.subr.mxu0 0.0
    %240 = vmatpush1.msra.mxu0 0.0
    %241 = vmatprep.subr.mxu0 0.0
    %242 = vmatpush1.msra.mxu0 0.0
    %243 = vmatprep.subr.mxu0 0.0
    %244 = vmatpush1.msra.mxu0 0.0
    %245 = vmatprep.subr.mxu0 0.0
    %246 = vmatpush1.msra.mxu0 0.0
    %247 = vmatprep.subr.mxu0 0.0
    %248 = vmatpush1.msra.mxu0 0.0
    %249 = vmatprep.subr.mxu0 0.0
    %250 = vmatpush1.msra.mxu0 0.0
    %251 = vmatprep.subr.mxu0 0.0
    %252 = vmatpush1.msra.mxu0 0.0
    %253 = vmatprep.subr.mxu0 0.0
    %254 = vmatpush1.msra.mxu0 0.0
    %255 = vmatprep.subr.mxu0 0.0
    %256 = vmatpush1.msra.mxu0 0.0
    %257 = vmatprep.subr.mxu0 0.0
    %258 = vmatpush1.msra.mxu0 0.0
    %259 = vmatprep.subr.mxu0 0.0
    %260 = vmatpush1.msra.mxu0 0.0
    %261 = vmatprep.subr.mxu0 0.0
    %262 = vmatpush1.msra.mxu0 0.0
    %263 = vmatprep.subr.mxu0 0.0
    %264 = vmatpush1.msra.mxu0 0.0
    %265 = vmatprep.subr.mxu0 0.0
    %266 = vmatpush1.msra.mxu0 0.0
    %267 = vmatprep.mubr.f32.mxu0 0.0
    %268 = vmatmul.mubr.f32.gmra.mrb[0].mxu0 %v201
    %v269 = vpop.f32.mrb[0].mxu0
    %v270 = vadd.f32 %v197, %v269
    %v271 = vpop.f32.mrb[0].mxu0
    %272 = vdwg.mxu0
    %v273 = vmax.f32 %v270, 0.0
    %v274 = vld [vmem:[%s5] sm:$0xff]
    %v275 = vld [vmem:[%s5 + $0x8] sm:$0xff]
    %v276 = vld [vmem:[%s5 + $0x10] sm:$0xff]
    %v277 = vld [vmem:[%s5 + $0x18] sm:$0xff]
    %v278 = vld [vmem:[#allocation5] sm:$0x1]
    %v280 = vlaneseq
    %v281 = vshrl.u32 %v280, 7
    %v282 = vsub.s32 0, %v281
    %v283 = vrot.slane %v278, %v282
    %v286 = vsel %vm109, %v273, 0
    %288 = vmatprep.subr.mxu0 0.0
    %289 = vmatpush1.msra.mxu0 %v274
    %290 = vmatprep.subr.mxu0 0.0
    %291 = vmatpush1.msra.mxu0 %v275
    %292 = vmatprep.subr.mxu0 0.0
    %293 = vmatpush1.msra.mxu0 %v276
    %294 = vmatprep.subr.mxu0 0.0
    %295 = vmatpush1.msra.mxu0 %v277
    %296 = vmatprep.subr.mxu0 0.0
    %297 = vmatpush1.msra.mxu0 0.0
    %298 = vmatprep.subr.mxu0 0.0
    %299 = vmatpush1.msra.mxu0 0.0
    %300 = vmatprep.subr.mxu0 0.0
    %301 = vmatpush1.msra.mxu0 0.0
    %302 = vmatprep.subr.mxu0 0.0
    %303 = vmatpush1.msra.mxu0 0.0
    %304 = vmatprep.subr.mxu0 0.0
    %305 = vmatpush1.msra.mxu0 0.0
    %306 = vmatprep.subr.mxu0 0.0
    %307 = vmatpush1.msra.mxu0 0.0
    %308 = vmatprep.subr.mxu0 0.0
    %309 = vmatpush1.msra.mxu0 0.0
    %310 = vmatprep.subr.mxu0 0.0
    %311 = vmatpush1.msra.mxu0 0.0
    %312 = vmatprep.subr.mxu0 0.0
    %313 = vmatpush1.msra.mxu0 0.0
    %314 = vmatprep.subr.mxu0 0.0
    %315 = vmatpush1.msra.mxu0 0.0
    %316 = vmatprep.subr.mxu0 0.0
    %317 = vmatpush1.msra.mxu0 0.0
    %318 = vmatprep.subr.mxu0 0.0
    %319 = vmatpush1.msra.mxu0 0.0
    %320 = vmatprep.subr.mxu0 0.0
    %321 = vmatpush1.msra.mxu0 0.0
    %322 = vmatprep.subr.mxu0 0.0
    %323 = vmatpush1.msra.mxu0 0.0
    %324 = vmatprep.subr.mxu0 0.0
    %325 = vmatpush1.msra.mxu0 0.0
    %326 = vmatprep.subr.mxu0 0.0
    %327 = vmatpush1.msra.mxu0 0.0
    %328 = vmatprep.subr.mxu0 0.0
    %329 = vmatpush1.msra.mxu0 0.0
    %330 = vmatprep.subr.mxu0 0.0
    %331 = vmatpush1.msra.mxu0 0.0
    %332 = vmatprep.subr.mxu0 0.0
    %333 = vmatpush1.msra.mxu0 0.0
    %334 = vmatprep.subr.mxu0 0.0
    %335 = vmatpush1.msra.mxu0 0.0
    %336 = vmatprep.subr.mxu0 0.0
    %337 = vmatpush1.msra.mxu0 0.0
    %338 = vmatprep.subr.mxu0 0.0
    %339 = vmatpush1.msra.mxu0 0.0
    %340 = vmatprep.subr.mxu0 0.0
    %341 = vmatpush1.msra.mxu0 0.0
    %342 = vmatprep.subr.mxu0 0.0
    %343 = vmatpush1.msra.mxu0 0.0
    %344 = vmatprep.subr.mxu0 0.0
    %345 = vmatpush1.msra.mxu0 0.0
    %346 = vmatprep.subr.mxu0 0.0
    %347 = vmatpush1.msra.mxu0 0.0
    %348 = vmatprep.subr.mxu0 0.0
    %349 = vmatpush1.msra.mxu0 0.0
    %350 = vmatprep.subr.mxu0 0.0
    %351 = vmatpush1.msra.mxu0 0.0
    %352 = vmatprep.mubr.f32.mxu0 0.0
    %353 = vmatmul.mubr.f32.gmra.mrb[0].mxu0 %v286
    %v354 = vpop.f32.mrb[0].mxu0
    %v355 = vadd.f32 %v283, %v354
    %v356 = vpop.f32.mrb[0].mxu0
    %357 = vdwg.mxu0
    %v358 = vmax.f32 %v355, 0.0
    %v359 = vld [vmem:[#allocation7] sm:$0xff]
    %v360 = vld [vmem:[#allocation7 + $0x8] sm:$0xff]
    %v361 = vld [vmem:[#allocation8] sm:$0x1]
    %v363 = vlaneseq
    %v364 = vshrl.u32 %v363, 7
    %v365 = vsub.s32 0, %v364
    %v366 = vrot.slane %v361, %v365
    %vm368 = vcmask 130048
    %v370 = vsel %vm368, %v358, 0
    %372 = vmatprep.subr.mxu0 0.0
    %373 = vmatpush1.msra.mxu0 %v359
    %374 = vmatprep.subr.mxu0 0.0
    %375 = vmatpush1.msra.mxu0 %v360
    %376 = vmatprep.subr.mxu0 0.0
    %377 = vmatpush1.msra.mxu0 0.0
    %378 = vmatprep.subr.mxu0 0.0
    %379 = vmatpush1.msra.mxu0 0.0
    %380 = vmatprep.subr.mxu0 0.0
    %381 = vmatpush1.msra.mxu0 0.0
    %382 = vmatprep.subr.mxu0 0.0
    %383 = vmatpush1.msra.mxu0 0.0
    %384 = vmatprep.subr.mxu0 0.0
    %385 = vmatpush1.msra.mxu0 0.0
    %386 = vmatprep.subr.mxu0 0.0
    %387 = vmatpush1.msra.mxu0 0.0
    %388 = vmatprep.subr.mxu0 0.0
    %389 = vmatpush1.msra.mxu0 0.0
    %390 = vmatprep.subr.mxu0 0.0
    %391 = vmatpush1.msra.mxu0 0.0
    %392 = vmatprep.subr.mxu0 0.0
    %393 = vmatpush1.msra.mxu0 0.0
    %394 = vmatprep.subr.mxu0 0.0
    %395 = vmatpush1.msra.mxu0 0.0
    %396 = vmatprep.subr.mxu0 0.0
    %397 = vmatpush1.msra.mxu0 0.0
    %398 = vmatprep.subr.mxu0 0.0
    %399 = vmatpush1.msra.mxu0 0.0
    %400 = vmatprep.subr.mxu0 0.0
    %401 = vmatpush1.msra.mxu0 0.0
    %402 = vmatprep.subr.mxu0 0.0
    %403 = vmatpush1.msra.mxu0 0.0
    %404 = vmatprep.subr.mxu0 0.0
    %405 = vmatpush1.msra.mxu0 0.0
    %406 = vmatprep.subr.mxu0 0.0
    %407 = vmatpush1.msra.mxu0 0.0
    %408 = vmatprep.subr.mxu0 0.0
    %409 = vmatpush1.msra.mxu0 0.0
    %410 = vmatprep.subr.mxu0 0.0
    %411 = vmatpush1.msra.mxu0 0.0
    %412 = vmatprep.subr.mxu0 0.0
    %413 = vmatpush1.msra.mxu0 0.0
    %414 = vmatprep.subr.mxu0 0.0
    %415 = vmatpush1.msra.mxu0 0.0
    %416 = vmatprep.subr.mxu0 0.0
    %417 = vmatpush1.msra.mxu0 0.0
    %418 = vmatprep.subr.mxu0 0.0
    %419 = vmatpush1.msra.mxu0 0.0
    %420 = vmatprep.subr.mxu0 0.0
    %421 = vmatpush1.msra.mxu0 0.0
    %422 = vmatprep.subr.mxu0 0.0
    %423 = vmatpush1.msra.mxu0 0.0
    %424 = vmatprep.subr.mxu0 0.0
    %425 = vmatpush1.msra.mxu0 0.0
    %426 = vmatprep.subr.mxu0 0.0
    %427 = vmatpush1.msra.mxu0 0.0
    %428 = vmatprep.subr.mxu0 0.0
    %429 = vmatpush1.msra.mxu0 0.0
    %430 = vmatprep.subr.mxu0 0.0
    %431 = vmatpush1.msra.mxu0 0.0
    %432 = vmatprep.subr.mxu0 0.0
    %433 = vmatpush1.msra.mxu0 0.0
    %434 = vmatprep.subr.mxu0 0.0
    %435 = vmatpush1.msra.mxu0 0.0
    %436 = vmatprep.mubr.f32.mxu0 0.0
    %437 = vmatmul.mubr.f32.gmra.mrb[0].mxu0 %v370
    %v438 = vpop.f32.mrb[0].mxu0
    %v439 = vadd.f32 %v366, %v438
    %v440 = vpop.f32.mrb[0].mxu0
    %441 = vdwg.mxu0
    %v442 = vmax.f32 %v439, 0.0
    %v443 = vld [vmem:[%s9] sm:$0xff]
    %v444 = vld [vmem:[%s9 + $0x8] sm:$0xff]
    %v445 = vld [vmem:[%s9 + $0x10] sm:$0xff]
    %v446 = vld [vmem:[%s9 + $0x18] sm:$0xff]
    %v447 = vld [vmem:[%s10] sm:$0x1]
    %v449 = vlaneseq
    %v450 = vshrl.u32 %v449, 7
    %v451 = vsub.s32 0, %v450
    %v452 = vrot.slane %v447, %v451
    %v455 = vsel %vm109, %v442, 0
    %457 = vmatprep.subr.mxu0 0.0
    %458 = vmatpush1.msra.mxu0 %v443
    %459 = vmatprep.subr.mxu0 0.0
    %460 = vmatpush1.msra.mxu0 %v444
    %461 = vmatprep.subr.mxu0 0.0
    %462 = vmatpush1.msra.mxu0 %v445
    %463 = vmatprep.subr.mxu0 0.0
    %464 = vmatpush1.msra.mxu0 %v446
    %465 = vmatprep.subr.mxu0 0.0
    %466 = vmatpush1.msra.mxu0 0.0
    %467 = vmatprep.subr.mxu0 0.0
    %468 = vmatpush1.msra.mxu0 0.0
    %469 = vmatprep.subr.mxu0 0.0
    %470 = vmatpush1.msra.mxu0 0.0
    %471 = vmatprep.subr.mxu0 0.0
    %472 = vmatpush1.msra.mxu0 0.0
    %473 = vmatprep.subr.mxu0 0.0
    %474 = vmatpush1.msra.mxu0 0.0
    %475 = vmatprep.subr.mxu0 0.0
    %476 = vmatpush1.msra.mxu0 0.0
    %477 = vmatprep.subr.mxu0 0.0
    %478 = vmatpush1.msra.mxu0 0.0
    %479 = vmatprep.subr.mxu0 0.0
    %480 = vmatpush1.msra.mxu0 0.0
    %481 = vmatprep.subr.mxu0 0.0
    %482 = vmatpush1.msra.mxu0 0.0
    %483 = vmatprep.subr.mxu0 0.0
    %484 = vmatpush1.msra.mxu0 0.0
    %485 = vmatprep.subr.mxu0 0.0
    %486 = vmatpush1.msra.mxu0 0.0
    %487 = vmatprep.subr.mxu0 0.0
    %488 = vmatpush1.msra.mxu0 0.0
    %489 = vmatprep.subr.mxu0 0.0
    %490 = vmatpush1.msra.mxu0 0.0
    %491 = vmatprep.subr.mxu0 0.0
    %492 = vmatpush1.msra.mxu0 0.0
    %493 = vmatprep.subr.mxu0 0.0
    %494 = vmatpush1.msra.mxu0 0.0
    %495 = vmatprep.subr.mxu0 0.0
    %496 = vmatpush1.msra.mxu0 0.0
    %497 = vmatprep.subr.mxu0 0.0
    %498 = vmatpush1.msra.mxu0 0.0
    %499 = vmatprep.subr.mxu0 0.0
    %500 = vmatpush1.msra.mxu0 0.0
    %501 = vmatprep.subr.mxu0 0.0
    %502 = vmatpush1.msra.mxu0 0.0
    %503 = vmatprep.subr.mxu0 0.0
    %504 = vmatpush1.msra.mxu0 0.0
    %505 = vmatprep.subr.mxu0 0.0
    %506 = vmatpush1.msra.mxu0 0.0
    %507 = vmatprep.subr.mxu0 0.0
    %508 = vmatpush1.msra.mxu0 0.0
    %509 = vmatprep.subr.mxu0 0.0
    %510 = vmatpush1.msra.mxu0 0.0
    %511 = vmatprep.subr.mxu0 0.0
    %512 = vmatpush1.msra.mxu0 0.0
    %513 = vmatprep.subr.mxu0 0.0
    %514 = vmatpush1.msra.mxu0 0.0
    %515 = vmatprep.subr.mxu0 0.0
    %516 = vmatpush1.msra.mxu0 0.0
    %517 = vmatprep.subr.mxu0 0.0
    %518 = vmatpush1.msra.mxu0 0.0
    %519 = vmatprep.subr.mxu0 0.0
    %520 = vmatpush1.msra.mxu0 0.0
    %521 = vmatprep.mubr.f32.mxu0 0.0
    %522 = vmatmul.mubr.f32.gmra.mrb[0].mxu0 %v455
    %v523 = vpop.f32.mrb[0].mxu0
    %v524 = vadd.f32 %v452, %v523
    %v525 = vpop.f32.mrb[0].mxu0
    %526 = vdwg.mxu0
    %v527 = vmax.f32 %v524, 0.0
    %v528 = vld [vmem:[%s11] sm:$0xff]
    %v529 = vld [vmem:[%s11 + $0x8] sm:$0xff]
    %v530 = vld [vmem:[%s11 + $0x10] sm:$0xff]
    %v531 = vld [vmem:[%s11 + $0x18] sm:$0xff]
    %v532 = vld [vmem:[%s11 + $0x20] sm:$0xff]
    %v533 = vld [vmem:[%s11 + $0x28] sm:$0xff]
    %v534 = vld [vmem:[%s11 + $0x30] sm:$0xff]
    %v535 = vld [vmem:[%s11 + $0x38] sm:$0xff]
    %v536 = vld [vmem:[%s12] sm:$0x1]
    %v538 = vlaneseq
    %v539 = vshrl.u32 %v538, 7
    %v540 = vsub.s32 0, %v539
    %v541 = vrot.slane %v536, %v540
    %v544 = vsel %vm199, %v527, 0
    %546 = vmatprep.subr.mxu0 0.0
    %547 = vmatpush1.msra.mxu0 %v528
    %548 = vmatprep.subr.mxu0 0.0
    %549 = vmatpush1.msra.mxu0 %v529
    %550 = vmatprep.subr.mxu0 0.0
    %551 = vmatpush1.msra.mxu0 %v530
    %552 = vmatprep.subr.mxu0 0.0
    %553 = vmatpush1.msra.mxu0 %v531
    %554 = vmatprep.subr.mxu0 0.0
    %555 = vmatpush1.msra.mxu0 %v532
    %556 = vmatprep.subr.mxu0 0.0
    %557 = vmatpush1.msra.mxu0 %v533
    %558 = vmatprep.subr.mxu0 0.0
    %559 = vmatpush1.msra.mxu0 %v534
    %560 = vmatprep.subr.mxu0 0.0
    %561 = vmatpush1.msra.mxu0 %v535
    %562 = vmatprep.subr.mxu0 0.0
    %563 = vmatpush1.msra.mxu0 0.0
    %564 = vmatprep.subr.mxu0 0.0
    %565 = vmatpush1.msra.mxu0 0.0
    %566 = vmatprep.subr.mxu0 0.0
    %567 = vmatpush1.msra.mxu0 0.0
    %568 = vmatprep.subr.mxu0 0.0
    %569 = vmatpush1.msra.mxu0 0.0
    %570 = vmatprep.subr.mxu0 0.0
    %571 = vmatpush1.msra.mxu0 0.0
    %572 = vmatprep.subr.mxu0 0.0
    %573 = vmatpush1.msra.mxu0 0.0
    %574 = vmatprep.subr.mxu0 0.0
    %575 = vmatpush1.msra.mxu0 0.0
    %576 = vmatprep.subr.mxu0 0.0
    %577 = vmatpush1.msra.mxu0 0.0
    %578 = vmatprep.subr.mxu0 0.0
    %579 = vmatpush1.msra.mxu0 0.0
    %580 = vmatprep.subr.mxu0 0.0
    %581 = vmatpush1.msra.mxu0 0.0
    %582 = vmatprep.subr.mxu0 0.0
    %583 = vmatpush1.msra.mxu0 0.0
    %584 = vmatprep.subr.mxu0 0.0
    %585 = vmatpush1.msra.mxu0 0.0
    %586 = vmatprep.subr.mxu0 0.0
    %587 = vmatpush1.msra.mxu0 0.0
    %588 = vmatprep.subr.mxu0 0.0
    %589 = vmatpush1.msra.mxu0 0.0
    %590 = vmatprep.subr.mxu0 0.0
    %591 = vmatpush1.msra.mxu0 0.0
    %592 = vmatprep.subr.mxu0 0.0
    %593 = vmatpush1.msra.mxu0 0.0
    %594 = vmatprep.subr.mxu0 0.0
    %595 = vmatpush1.msra.mxu0 0.0
    %596 = vmatprep.subr.mxu0 0.0
    %597 = vmatpush1.msra.mxu0 0.0
    %598 = vmatprep.subr.mxu0 0.0
    %599 = vmatpush1.msra.mxu0 0.0
    %600 = vmatprep.subr.mxu0 0.0
    %601 = vmatpush1.msra.mxu0 0.0
    %602 = vmatprep.subr.mxu0 0.0
    %603 = vmatpush1.msra.mxu0 0.0
    %604 = vmatprep.subr.mxu0 0.0
    %605 = vmatpush1.msra.mxu0 0.0
    %606 = vmatprep.subr.mxu0 0.0
    %607 = vmatpush1.msra.mxu0 0.0
    %608 = vmatprep.subr.mxu0 0.0
    %609 = vmatpush1.msra.mxu0 0.0
    %610 = vmatprep.mubr.f32.mxu0 0.0
    %611 = vmatmul.mubr.f32.gmra.mrb[0].mxu0 %v544
    %v612 = vpop.f32.mrb[0].mxu0
    %v613 = vadd.f32 %v541, %v612
    %v614 = vpop.f32.mrb[0].mxu0
    %615 = vdwg.mxu0
    %v616 = vld [vmem:[%s13] sm:$0xff]
    %v617 = vld [vmem:[%s13 + $0x8] sm:$0xff]
    %618 = vmatprep.subr.mxu0 0.0
    %619 = vmatpush1.msra.mxu0 %v616
    %620 = vmatprep.subr.mxu0 0.0
    %621 = vmatpush1.msra.mxu0 %v617
    %622 = vmatprep.subr.mxu0 0.0
    %623 = vmatpush1.msra.mxu0 0.0
    %624 = vmatprep.subr.mxu0 0.0
    %625 = vmatpush1.msra.mxu0 0.0
    %626 = vmatprep.subr.mxu0 0.0
    %627 = vmatpush1.msra.mxu0 0.0
    %628 = vmatprep.subr.mxu0 0.0
    %629 = vmatpush1.msra.mxu0 0.0
    %630 = vmatprep.subr.mxu0 0.0
    %631 = vmatpush1.msra.mxu0 0.0
    %632 = vmatprep.subr.mxu0 0.0
    %633 = vmatpush1.msra.mxu0 0.0
    %634 = vmatprep.subr.mxu0 0.0
    %635 = vmatpush1.msra.mxu0 0.0
    %636 = vmatprep.subr.mxu0 0.0
    %637 = vmatpush1.msra.mxu0 0.0
    %638 = vmatprep.subr.mxu0 0.0
    %639 = vmatpush1.msra.mxu0 0.0
    %640 = vmatprep.subr.mxu0 0.0
    %641 = vmatpush1.msra.mxu0 0.0
    %642 = vmatprep.subr.mxu0 0.0
    %643 = vmatpush1.msra.mxu0 0.0
    %644 = vmatprep.subr.mxu0 0.0
    %645 = vmatpush1.msra.mxu0 0.0
    %646 = vmatprep.subr.mxu0 0.0
    %647 = vmatpush1.msra.mxu0 0.0
    %648 = vmatprep.subr.mxu0 0.0
    %649 = vmatpush1.msra.mxu0 0.0
    %650 = vmatprep.subr.mxu0 0.0
    %651 = vmatpush1.msra.mxu0 0.0
    %652 = vmatprep.subr.mxu0 0.0
    %653 = vmatpush1.msra.mxu0 0.0
    %654 = vmatprep.subr.mxu0 0.0
    %655 = vmatpush1.msra.mxu0 0.0
    %656 = vmatprep.subr.mxu0 0.0
    %657 = vmatpush1.msra.mxu0 0.0
    %658 = vmatprep.subr.mxu0 0.0
    %659 = vmatpush1.msra.mxu0 0.0
    %660 = vmatprep.subr.mxu0 0.0
    %661 = vmatpush1.msra.mxu0 0.0
    %662 = vmatprep.subr.mxu0 0.0
    %663 = vmatpush1.msra.mxu0 0.0
    %664 = vmatprep.subr.mxu0 0.0
    %665 = vmatpush1.msra.mxu0 0.0
    %666 = vmatprep.subr.mxu0 0.0
    %667 = vmatpush1.msra.mxu0 0.0
    %668 = vmatprep.subr.mxu0 0.0
    %669 = vmatpush1.msra.mxu0 0.0
    %670 = vmatprep.subr.mxu0 0.0
    %671 = vmatpush1.msra.mxu0 0.0
    %672 = vmatprep.subr.mxu0 0.0
    %673 = vmatpush1.msra.mxu0 0.0
    %674 = vmatprep.subr.mxu0 0.0
    %675 = vmatpush1.msra.mxu0 0.0
    %676 = vmatprep.subr.mxu0 0.0
    %677 = vmatpush1.msra.mxu0 0.0
    %678 = vmatprep.subr.mxu0 0.0
    %679 = vmatpush1.msra.mxu0 0.0
    %680 = vmatprep.subr.mxu0 0.0
    %681 = vmatpush1.msra.mxu0 0.0
    %682 = vmatprep.mubr.f32.mxu0 0.0
    %683 = vmatmul.mubr.f32.gmra.mrb[0].mxu0 %v370
    %v684 = vpop.f32.mrb[0].mxu0
    %v685 = vadd.f32 0.0, %v684
    %v686 = vpop.f32.mrb[0].mxu0
    %687 = vdwg.mxu0
    %v688 = vadd.f32 %v613, %v685
    %689 = vst [vmem:[#allocation10] sm:$0xff] %v688
    // Predicated region
    $region74: #{tpu_custom_call.1} parent=1 // pred_check
      _
    $region75: #{tpu_custom_call.1} parent=1 // pred_check_branch
      %691 = sbr.rel (0) target = $region77
    $region76: #{tpu_custom_call.1} parent=1 // pred_region
      %s693 = ssub.s32 128, 128
      %694 = vsyncadd [#allocation4], %s693
      %s696 = sshll.u32 [#allocation10], 4
      %s697 = int_to_ptr.vmem [resolvable:$true] %s696
      %699 = dma.vmem_to_hbm [thread:$0]  %s697, 128, %s14, [#allocation4]
    $region77: #{tpu_custom_call.1} parent=1 // pred_fallthru
      _
    // Predicated region
    $region78: #{tpu_custom_call.1} parent=1 // pred_check
      _
    $region79: #{tpu_custom_call.1} parent=1 // pred_check_branch
      %701 = sbr.rel (0) target = $region81
    $region80: #{tpu_custom_call.1} parent=1 // pred_region
      %702 = dma.done [#allocation4], 128
    $region81: #{tpu_custom_call.1} parent=1 // pred_fallthru
      _
    %703 = vsyncpa [#allocation3], 1
    %704 = vsyncpa [#allocation6], 1
    %705 = vsyncpa [#allocation9], 1
    %706 = vsyncpa [#allocation4], 1

</llo_original>
